<compile_context>
chip_gen: v7x
topology: tpu7x:2x2x1
jax: 0.10.0
libtpu: 0.0.40
codegen_flags: <defaults>
</compile_context>

<pallas_src>
import functools
import math

import jax
import jax.numpy as jnp
from jax.experimental import pallas as pl
from jax.experimental.pallas import tpu as pltpu

_VMEM = pl.BlockSpec(memory_space=pltpu.MemorySpace.VMEM)


# ------------------------------- small helpers ------------------------------ #
def _round_up(x, m):
    return ((x + m - 1) // m) * m


def _vmem_capacity_bytes():
    try:
        info = pltpu.get_tpu_info()
        cap = getattr(info, "vmem_capacity_bytes", None)
        if cap:
            return int(max(32 << 20, min(int(cap), 256 << 20)))
    except Exception:
        pass
    return 64 << 20           # conservative fallback (v7x per-core VMEM)


def _pick_row_tile(n, cap=512):
    if n <= cap:
        return n
    for t in range(cap, 7, -8):
        if n % t == 0:
            return t
    return n


def _conv_vmem_bytes(tile_t, n, edge_dim, heads, head_dim, d_in_pad, c_out_pad):
    """Per-grid-step VMEM live set for the conv kernel (double-buffered streams,
    resident K/V and weight blocks, f32 score/alpha temporaries and scratch)."""
    h_pad = _round_up(heads, 8)
    b = 0
    b += 2 * tile_t * n * edge_dim * 2             # edge tile (bf16, double-buffered)
    b += 2 * tile_t * n * 2                        # mask tile (bf16, double-buffered)
    b += 2 * tile_t * d_in_pad * 4                 # x tile (f32, double-buffered)
    b += 2 * tile_t * c_out_pad * 4                # out tile (f32, double-buffered)
    b += 2 * 2 * heads * n * head_dim * 2          # resident K^T and V blocks (2 bufs each)
    b += 2 * heads * head_dim * (d_in_pad + 2 * edge_dim) * 2   # Wq / We^T / We
    b += 2 * (d_in_pad * head_dim * 2 + (heads + 1) * head_dim * 8)  # W_skip + biases
    b += tile_t * h_pad * (n + edge_dim) * 4       # alpha / qw scratch (f32, sublane-padded)
    b += 2 * tile_t * heads * n * 4                # batched s_qe value + temporaries
    b += 3 * tile_t * n * 4                        # per-head s / p / exp live values
    b += 4 * tile_t * heads * max(head_dim, edge_dim) * 4   # q list / ae / acc
    return b


def _choose_tile_t(n, edge_dim, heads, head_dim, d_in_pad, c_out_pad, budget):
    cands = [t for t in range(16, n + 1, 16) if n % t == 0]
    fits = [t for t in cands if _conv_vmem_bytes(t, n, edge_dim, heads, head_dim,
                                                 d_in_pad, c_out_pad) <= budget]
    multi = [t for t in fits if n // t >= 2]       # >=2 steps: pipelining + megacore
    if multi:
        return max(multi)
    if fits:
        return max(fits)
    if cands:
        return min(cands)
    return n


# ------------------------------ Pallas kernels ------------------------------ #
def _linear_kernel(x_ref, w_ref, b_ref, o_ref):
    o_ref[...] = (jnp.dot(x_ref[...], w_ref[...], preferred_element_type=jnp.float32)
                  + b_ref[...])


def linear_pallas(x, w, b):
    """y = x @ w + b, tiled over rows with a 1-D parallel grid."""
    n, d_in = x.shape
    d_out = w.shape[1]
    tile = _pick_row_tile(n)
    return pl.pallas_call(
        _linear_kernel,
        out_shape=jax.ShapeDtypeStruct((n, d_out), jnp.float32),
        grid=(n // tile,),
        in_specs=[pl.BlockSpec((tile, d_in), lambda r: (r, 0)),
                  pl.BlockSpec((d_in, d_out), lambda r: (0, 0)),
                  pl.BlockSpec((1, d_out), lambda r: (0, 0))],
        out_specs=pl.BlockSpec((tile, d_out), lambda r: (r, 0)),
        compiler_params=pltpu.CompilerParams(dimension_semantics=("parallel",)),
    )(x, w, b.reshape(1, -1))


def _kv_proj_kernel(x_ref, xt_ref, wkt_ref, bkt_ref, wv_ref, bv_ref, kt_ref, v_ref):
    """Per-head K/V projection; K is written pre-transposed [C, N] in bf16."""
    f32, bf16 = jnp.float32, jnp.bfloat16
    xb = x_ref[...].astype(bf16)
    xtb = xt_ref[...].astype(bf16)
    kt = jnp.dot(wkt_ref[...], xtb, preferred_element_type=f32) + bkt_ref[...]   # [C, N]
    vv = jnp.dot(xb, wv_ref[...], preferred_element_type=f32) + bv_ref[...]      # [N, C]
    kt_ref[...] = kt.astype(bf16)
    v_ref[...] = vv.astype(bf16)


def kv_proj_pallas(x, xt, prep, *, heads, head_dim, vmem_limit):
    n, d_in = x.shape
    return pl.pallas_call(
        _kv_proj_kernel,
        out_shape=(jax.ShapeDtypeStruct((heads, head_dim, n), jnp.bfloat16),
                   jax.ShapeDtypeStruct((heads, n, head_dim), jnp.bfloat16)),
        grid=(heads,),
        in_specs=[
            pl.BlockSpec((n, d_in), lambda h: (0, 0)),                  # x   (resident)
            pl.BlockSpec((d_in, n), lambda h: (0, 0)),                  # x^T (resident)
            pl.BlockSpec((None, head_dim, d_in), lambda h: (h, 0, 0)),  # Wk^T
            pl.BlockSpec((None, head_dim, 1), lambda h: (h, 0, 0)),     # bk^T
            pl.BlockSpec((None, d_in, head_dim), lambda h: (h, 0, 0)),  # Wv
            pl.BlockSpec((None, 1, head_dim), lambda h: (h, 0, 0)),     # bv
        ],
        out_specs=(pl.BlockSpec((None, head_dim, n), lambda h: (h, 0, 0)),
                   pl.BlockSpec((None, n, head_dim), lambda h: (h, 0, 0))),
        compiler_params=pltpu.CompilerParams(
            dimension_semantics=("parallel",),
            vmem_limit_bytes=vmem_limit,
        ),
    )(x, xt, prep["wkt"], prep["bkt"], prep["wv"], prep["bv"])


def _transformer_conv_kernel(x_ref, kt_ref, v_ref, e_ref, mask_ref,
                             wq_ref, bq_ref, wet_ref, we_ref, wskip_ref, bskip_ref,
                             o_ref, qw_scr, alpha_scr, *, heads, head_dim, c_out_pad):
    """One target-node tile of a PyG TransformerConv layer
    (edge_dim set, concat=False, root_weight=True), followed by ReLU.

      x     : [T, Dp]   f32   (lane-padded layer input; also used for skip and Q)
      K^T   : [H, C, N] bf16       V : [H, N, C] bf16
      e     : [T, N, Ed] bf16  (densified edge embeddings, 0 where no edge)
      mask  : [T, N]    bf16   (1.0 where an edge src->tgt exists)
    """
    f32, bf16 = jnp.float32, jnp.bfloat16
    x = x_ref[...]
    xb = x.astype(bf16)
    t_sz = x.shape[0]
    e = e_ref[...]
    maskf = mask_ref[...].astype(f32)
    neg = (maskf - 1.0) * 1e30                     # additive -inf bias for missing edges

    # q per head (1/sqrt(C) folded into Wq/bq) and its edge-projected form q.We^T
    q_heads = []
    for h in range(heads):
        q_h = jnp.dot(xb, wq_ref[h], preferred_element_type=f32) + bq_ref[h]     # [T, C]
        q_hb = q_h.astype(bf16)
        q_heads.append(q_hb)
        qw_scr[:, h, :] = jnp.dot(q_hb, wet_ref[h], preferred_element_type=f32)  # [T, Ed]

    # edge score term, batched over target rows (M = heads per row, MXU)
    s_qe = jnp.einsum('the,tne->thn', qw_scr[...].astype(bf16), e,
                      preferred_element_type=f32)                                # [T, H, N]

    # per-head masked softmax + value aggregation (full [T, N] vregs per head)
    acc = jnp.zeros((t_sz, head_dim), f32)
    for h in range(heads):
        s_h = jnp.dot(q_heads[h], kt_ref[h], preferred_element_type=f32)         # [T, N]
        s_h = s_h + s_qe[:, h, :] + neg
        m_h = jnp.max(s_h, axis=-1, keepdims=True)
        p_h = jnp.exp(s_h - m_h) * maskf           # isolated rows stay exactly zero
        den = jnp.sum(p_h, axis=-1, keepdims=True)
        inv = jnp.where(den > 0.0, pl.reciprocal(den, approx=True), 0.0)
        a_h = p_h * inv
        alpha_scr[:, h, :] = a_h
        acc = acc + jnp.dot(a_h.astype(bf16), v_ref[h], preferred_element_type=f32)

    # edge value term, batched over target rows (M = heads per row, MXU)
    ae = jnp.einsum('thn,tne->the', alpha_scr[...].astype(bf16), e,
                    preferred_element_type=f32)                                  # [T, H, Ed]
    for h in range(heads):
        acc = acc + jnp.dot(ae[:, h, :].astype(bf16), we_ref[h],
                            preferred_element_type=f32)

    out = acc * (1.0 / heads)                      # concat=False -> mean over heads
    skip = jnp.dot(xb, wskip_ref[...], preferred_element_type=f32) + bskip_ref[...]
    res = jnp.maximum(out + skip, 0.0)

    if c_out_pad > head_dim:                       # lane-dense padded output block
        o_ref[...] = jnp.zeros((t_sz, c_out_pad), f32)
        o_ref[:, :head_dim] = res
    else:
        o_ref[...] = res


def transformer_conv_pallas(x, kt, v, e_dense, mask, prep, *, heads, head_dim,
                            c_out_pad, tile_t, vmem_limit):
    n, d_in = x.shape
    ed = e_dense.shape[-1]
    assert tile_t == n or (n % tile_t == 0 and tile_t % 16 == 0), (n, tile_t)
    kernel = functools.partial(_transformer_conv_kernel, heads=heads,
                               head_dim=head_dim, c_out_pad=c_out_pad)
    # TODO(synk): once pl.Buffered(1) is verified on this toolchain, single-buffer the
    # grid-invariant K^T / V / weight blocks to free VMEM for larger edge tiles.
    return pl.pallas_call(
        kernel,
        out_shape=jax.ShapeDtypeStruct((n, c_out_pad), jnp.float32),
        grid=(n // tile_t,),
        in_specs=[
            pl.BlockSpec((tile_t, d_in), lambda t: (t, 0)),               # x tile
            pl.BlockSpec((heads, head_dim, n), lambda t: (0, 0, 0)),      # K^T (resident)
            pl.BlockSpec((heads, n, head_dim), lambda t: (0, 0, 0)),      # V   (resident)
            pl.BlockSpec((tile_t, n, ed), lambda t: (t, 0, 0)),           # edge tile
            pl.BlockSpec((tile_t, n), lambda t: (t, 0)),                  # mask tile
            pl.BlockSpec((heads, d_in, head_dim), lambda t: (0, 0, 0)),   # Wq (scaled)
            pl.BlockSpec((heads, 1, head_dim), lambda t: (0, 0, 0)),      # bq (scaled)
            pl.BlockSpec((heads, head_dim, ed), lambda t: (0, 0, 0)),     # We^T
            pl.BlockSpec((heads, ed, head_dim), lambda t: (0, 0, 0)),     # We
            pl.BlockSpec((d_in, head_dim), lambda t: (0, 0)),             # W_skip
            pl.BlockSpec((1, head_dim), lambda t: (0, 0)),                # b_skip
        ],
        out_specs=pl.BlockSpec((tile_t, c_out_pad), lambda t: (t, 0)),
        scratch_shapes=[
            pltpu.VMEM((tile_t, heads, ed), jnp.float32),                 # q.We^T stash
            pltpu.VMEM((tile_t, heads, n), jnp.float32),                  # alpha stash
        ],
        compiler_params=pltpu.CompilerParams(
            dimension_semantics=("parallel",),
            vmem_limit_bytes=vmem_limit,
        ),
    )(x, kt, v, e_dense, mask, prep["wq"], prep["bq"], prep["wet"], prep["we"],
      prep["wskip"], prep["bskip"])


def _pool_out_kernel(pool_ref, x_ref, w_ref, b_ref, o_ref):
    pooled = jnp.dot(pool_ref[...], x_ref[...], preferred_element_type=jnp.float32)
    o_ref[...] = jnp.dot(pooled, w_ref[...], preferred_element_type=jnp.float32) + b_ref[...]


def pool_out_pallas(pool_mat, x, w, b):
    g = pool_mat.shape[0]
    return pl.pallas_call(
        _pool_out_kernel,
        out_shape=jax.ShapeDtypeStruct((g, w.shape[1]), jnp.float32),
        in_specs=[_VMEM] * 4,
        out_specs=_VMEM,
    )(pool_mat, x, w, b.reshape(1, -1))


# ------------------------------ glue / wrapper ------------------------------ #
def prepare_conv_params(layer, *, d_in_pad, heads, head_dim):
    d_in = layer["wq"].shape[0]
    ed = layer["we"].shape[0]
    pad = d_in_pad - d_in
    scale = 1.0 / math.sqrt(head_dim)
    bf16 = jnp.bfloat16

    def heads_major(w):                           # [d_in, H*C] -> [H, d_in, C]
        return w.reshape(d_in, heads, head_dim).transpose(1, 0, 2)

    wq = jnp.pad(heads_major(layer["wq"] * scale), ((0, 0), (0, pad), (0, 0))).astype(bf16)
    bq = (layer["bq"] * scale).reshape(heads, 1, head_dim).astype(jnp.float32)
    wkt = jnp.pad(heads_major(layer["wk"]).transpose(0, 2, 1),
                  ((0, 0), (0, 0), (0, pad))).astype(bf16)            # [H, C, Dp]
    bkt = layer["bk"].reshape(heads, head_dim, 1).astype(jnp.float32)
    wv = jnp.pad(heads_major(layer["wv"]), ((0, 0), (0, pad), (0, 0))).astype(bf16)
    bv = layer["bv"].reshape(heads, 1, head_dim).astype(jnp.float32)
    we = layer["we"].reshape(ed, heads, head_dim).transpose(1, 0, 2).astype(bf16)  # [H,Ed,C]
    wet = jnp.transpose(we, (0, 2, 1))                                             # [H,C,Ed]
    wskip = jnp.pad(layer["wskip"], ((0, pad), (0, 0))).astype(bf16)
    bskip = layer["bskip"].reshape(1, -1).astype(jnp.float32)
    return dict(wq=wq, bq=bq, wkt=wkt, bkt=bkt, wv=wv, bv=bv,
                we=we, wet=wet, wskip=wskip, bskip=bskip)


def run_conv_layer(x, e_dense, mask, prep, *, heads, head_dim, c_out_pad, tile_t,
                   vmem_limit):
    kt, v = kv_proj_pallas(x, x.T, prep, heads=heads, head_dim=head_dim,
                           vmem_limit=vmem_limit)
    return transformer_conv_pallas(x, kt, v, e_dense, mask, prep, heads=heads,
                                   head_dim=head_dim, c_out_pad=c_out_pad,
                                   tile_t=tile_t, vmem_limit=vmem_limit)


def densify_edges(e_emb, edge_index, num_nodes):
    # TODO(synk): replace this dense O(N^2) scatter with a sparse/CSR gather kernel
    # (PrefetchScalarGridSpec neighbor lists) so edge work scales with E instead of N^2.
    src, dst = edge_index[0], edge_index[1]
    ed = e_emb.shape[1]
    e_dense = (jnp.zeros((num_nodes, num_nodes, ed), jnp.bfloat16)
               .at[dst, src].set(e_emb.astype(jnp.bfloat16)))
    mask = jnp.zeros((num_nodes, num_nodes), jnp.bfloat16).at[dst, src].set(1.0)
    return e_dense, mask


def init_linear(key, d_in, d_out, bias=True):
    kw, kb = jax.random.split(key)
    s = 1.0 / math.sqrt(d_in)
    w = jax.random.uniform(kw, (d_in, d_out), jnp.float32, -s, s)
    b = jax.random.uniform(kb, (d_out,), jnp.float32, -s, s) if bias else None
    return w, b


def init_params(key, init_atom_dim, atom_dim, init_edge_dim, edge_dim,
                hidden_dim, num_convs, out_channels, heads):
    keys = jax.random.split(key, 3 + num_convs)
    params = {}
    params["atom_w"], params["atom_b"] = init_linear(keys[0], init_atom_dim, atom_dim)
    params["edge_w"], params["edge_b"] = init_linear(keys[1], init_edge_dim, edge_dim)
    convs = []
    for i in range(num_convs):
        lk = jax.random.split(keys[3 + i], 5)
        wq, bq = init_linear(lk[0], atom_dim, heads * hidden_dim)
        wk, bk = init_linear(lk[1], atom_dim, heads * hidden_dim)
        wv, bv = init_linear(lk[2], atom_dim, heads * hidden_dim)
        we, _ = init_linear(lk[3], edge_dim, heads * hidden_dim, bias=False)
        wskip, bskip = init_linear(lk[4], atom_dim, hidden_dim)
        convs.append(dict(wq=wq, bq=bq, wk=wk, bk=bk, wv=wv, bv=bv,
                          we=we, wskip=wskip, bskip=bskip))
    params["convs"] = convs
    params["out_w"], params["out_b"] = init_linear(keys[2], hidden_dim, out_channels)
    return params


def crystal_transformer_forward(params, x, edge_index, edge_attr, batch, num_graphs,
                                *, heads, hidden_dim, tile_t=None):
    n = x.shape[0]
    atom_dim = params["atom_w"].shape[1]
    d0_pad = _round_up(atom_dim, 128)
    c_out_pad = _round_up(hidden_dim, 128)

    cap = _vmem_capacity_bytes()
    budget = int(cap * 0.5)
    vmem_limit = int(cap * 0.8)

    # atom embedding, lane-padded to a multiple of 128 (extra columns are exact zeros)
    atom_w_p = jnp.pad(params["atom_w"], ((0, 0), (0, d0_pad - atom_dim)))
    atom_b_p = jnp.pad(params["atom_b"], (0, d0_pad - atom_dim))
    h = linear_pallas(x, atom_w_p, atom_b_p)                        # [N, Dp]
    e_emb = linear_pallas(edge_attr, params["edge_w"], params["edge_b"])
    ed = e_emb.shape[1]
    e_dense, mask = densify_edges(e_emb, edge_index, n)             # bf16, built once

    d_in_pads = []
    for i, layer in enumerate(params["convs"]):
        d_in_raw = layer["wq"].shape[0]
        if i == 0:
            assert d_in_raw == atom_dim
            d_in_pads.append(d0_pad)
        else:
            assert d_in_raw == hidden_dim, "stacked layers require atom_dim == hidden_dim"
            d_in_pads.append(c_out_pad)

    if tile_t is None:
        tile_t = _choose_tile_t(n, ed, heads, hidden_dim, max(d_in_pads), c_out_pad,
                                budget)

    preps = [prepare_conv_params(layer, d_in_pad=dp, heads=heads, head_dim=hidden_dim)
             for layer, dp in zip(params["convs"], d_in_pads)]
    for prep in preps:
        h = run_conv_layer(h, e_dense, mask, prep, heads=heads, head_dim=hidden_dim,
                           c_out_pad=c_out_pad, tile_t=tile_t, vmem_limit=vmem_limit)

    onehot = (batch[None, :] == jnp.arange(num_graphs)[:, None]).astype(jnp.float32)
    pool_mat = onehot / jnp.maximum(jnp.sum(onehot, axis=1, keepdims=True), 1.0)
    out_w_p = jnp.pad(params["out_w"], ((0, c_out_pad - hidden_dim), (0, 0)))
    y = pool_out_pallas(pool_mat, h, out_w_p, params["out_b"])
    return jnp.squeeze(y)


# pure-JAX f32 reference (same math, no Pallas) for a sanity check
def reference_forward(params, x, edge_index, edge_attr, batch, num_graphs,
                      *, heads, hidden_dim):
    n = x.shape[0]
    h = x @ params["atom_w"] + params["atom_b"]
    e_emb = edge_attr @ params["edge_w"] + params["edge_b"]
    src, dst = edge_index[0], edge_index[1]
    e_dense = jnp.zeros((n, n, e_emb.shape[1]), jnp.float32).at[dst, src].set(e_emb)
    mask = jnp.zeros((n, n), jnp.float32).at[dst, src].set(1.0)
    e_flat = e_dense.reshape(n * n, -1)
    for layer in params["convs"]:
        q = h @ layer["wq"] + layer["bq"]
        k = h @ layer["wk"] + layer["bk"]
        v = h @ layer["wv"] + layer["bv"]
        e = e_flat @ layer["we"]
        C = hidden_dim
        acc = jnp.zeros((n, C), jnp.float32)
        for hh in range(heads):
            sl = slice(hh * C, (hh + 1) * C)
            qh, kh, vh = q[:, sl], k[:, sl], v[:, sl]
            eh = e[:, sl].reshape(n, n, C)
            s = (qh @ kh.T + jnp.sum(qh[:, None, :] * eh, axis=-1)) / math.sqrt(C)
            s = jnp.where(mask > 0.0, s, -1e30)
            m = jnp.max(s, axis=1, keepdims=True)
            p = jnp.exp(s - m) * mask
            denom = jnp.sum(p, axis=1, keepdims=True)
            alpha = p * jnp.where(denom > 0.0, 1.0 / denom, 0.0)
            acc = acc + alpha @ vh + jnp.sum(alpha[:, :, None] * eh, axis=1)
        out = acc / float(heads)
        h = jnp.maximum(out + h @ layer["wskip"] + layer["bskip"], 0.0)
    onehot = (batch[None, :] == jnp.arange(num_graphs)[:, None]).astype(jnp.float32)
    pool_mat = onehot / jnp.maximum(jnp.sum(onehot, axis=1, keepdims=True), 1.0)
    return jnp.squeeze(pool_mat @ h @ params["out_w"] + params["out_b"])


if __name__ == "__main__":
    # small deterministic problem: 2 graphs x 16 nodes, bidirectional ring edges per graph
    num_graphs, nodes_per_graph = 2, 16
    N = num_graphs * nodes_per_graph
    init_atom_dim, atom_dim = 8, 32
    init_edge_dim, edge_dim = 4, 32
    hidden_dim, num_convs, heads, out_channels = 32, 2, 4, 1

    src, dst = [], []
    for g in range(num_graphs):
        base = g * nodes_per_graph
        for j in range(nodes_per_graph):
            a, b = base + j, base + (j + 1) % nodes_per_graph
            src += [a, b]
            dst += [b, a]
    edge_index = jnp.array([src, dst], dtype=jnp.int32)          # [2, E], row0=src, row1=tgt
    E = edge_index.shape[1]

    key = jax.random.PRNGKey(0)
    kx, ke, kp = jax.random.split(key, 3)
    x = jax.random.normal(kx, (N, init_atom_dim), jnp.float32)
    edge_attr = jax.random.normal(ke, (E, init_edge_dim), jnp.float32)
    batch = jnp.repeat(jnp.arange(num_graphs, dtype=jnp.int32), nodes_per_graph)

    params = init_params(kp, init_atom_dim, atom_dim, init_edge_dim, edge_dim,
                         hidden_dim, num_convs, out_channels, heads)

    # auto tile: for N=32 the chooser picks tile_t=16 -> a 2-step "parallel" grid
    out = crystal_transformer_forward(params, x, edge_index, edge_attr, batch, num_graphs,
                                      heads=heads, hidden_dim=hidden_dim)
    out = jax.block_until_ready(out)

    ref = reference_forward(params, x, edge_index, edge_attr, batch, num_graphs,
                            heads=heads, hidden_dim=hidden_dim)
    assert out.shape == (num_graphs,), out.shape
    # bf16 MXU operands (f32 accumulation) + approximate reciprocal => looser tolerance
    assert jnp.allclose(out, ref, atol=4e-2, rtol=4e-2), (out, ref)
    print("KERNEL_OK")
</pallas_src>

<mosaic_0001>
module attributes {stable_mosaic.version = 11 : i64} {
  func.func @_linear_kernel(%arg0: i32, %arg1: memref<32x8xf32, #tpu.memory_space<vmem>>, %arg2: memref<8x128xf32, #tpu.memory_space<vmem>>, %arg3: memref<1x128xf32, #tpu.memory_space<vmem>>, %arg4: memref<32x128xf32, #tpu.memory_space<vmem>>) attributes {dimension_semantics = [#tpu.dimension_semantics<parallel>], iteration_bounds = array<i64: 1>, scalar_prefetch = 0 : i64, scratch_operands = 0 : i64, tpu.core_type = #tpu.core_type<tc>, window_params = [{transform_indices = @transform_0, window_bounds = array<i64: 32, 8>}, {pipeline_mode = #tpu.pipeline_mode<synchronous>, transform_indices = @transform_1, window_bounds = array<i64: 8, 128>}, {pipeline_mode = #tpu.pipeline_mode<synchronous>, transform_indices = @transform_2, window_bounds = array<i64: 1, 128>}, {transform_indices = @transform_3, window_bounds = array<i64: 32, 128>}]} {
    %c0 = arith.constant 0 : index
    %c0_0 = arith.constant 0 : index
    %0 = vector.load %arg1[%c0, %c0_0] : memref<32x8xf32, #tpu.memory_space<vmem>>, vector<32x8xf32>
    %c0_1 = arith.constant 0 : index
    %c0_2 = arith.constant 0 : index
    %1 = vector.load %arg2[%c0_1, %c0_2] : memref<8x128xf32, #tpu.memory_space<vmem>>, vector<8x128xf32>
    %cst = arith.constant dense<0.000000e+00> : vector<32x128xf32>
    %2 = tpu.matmul %0, %1, %cst {dimension_numbers = #tpu.dot_dimension_numbers<[1], [0], [0], [1], [0, 0, 1, 1], [], []>} : vector<32x8xf32>, vector<8x128xf32>, vector<32x128xf32> -> vector<32x128xf32>
    %c0_3 = arith.constant 0 : index
    %c0_4 = arith.constant 0 : index
    %3 = vector.load %arg3[%c0_3, %c0_4] : memref<1x128xf32, #tpu.memory_space<vmem>>, vector<1x128xf32>
    %4 = vector.broadcast %3 : vector<1x128xf32> to vector<32x128xf32>
    %5 = arith.addf %2, %4 : vector<32x128xf32>
    %c0_5 = arith.constant 0 : index
    %c0_6 = arith.constant 0 : index
    %6 = vector.load %arg4[%c0_5, %c0_6] : memref<32x128xf32, #tpu.memory_space<vmem>>, vector<32x128xf32>
    tpu.vector_store %arg4[%c0_5, %c0_6], %5 {strides = array<i32>} : memref<32x128xf32, #tpu.memory_space<vmem>>, vector<32x128xf32>,
    return
  }
  func.func @transform_0(%arg0: i32) -> (i32, i32) {
    %c0_i32 = arith.constant 0 : i32
    %c0_i32_0 = arith.constant 0 : i32
    return %arg0, %c0_i32 : i32, i32
  }
  func.func @transform_1(%arg0: i32) -> (i32, i32) {
    %c0_i32 = arith.constant 0 : i32
    %c0_i32_0 = arith.constant 0 : i32
    %c0_i32_1 = arith.constant 0 : i32
    return %c0_i32, %c0_i32_0 : i32, i32
  }
  func.func @transform_2(%arg0: i32) -> (i32, i32) {
    %c0_i32 = arith.constant 0 : i32
    %c0_i32_0 = arith.constant 0 : i32
    %c0_i32_1 = arith.constant 0 : i32
    return %c0_i32, %c0_i32_0 : i32, i32
  }
  func.func @transform_3(%arg0: i32) -> (i32, i32) {
    %c0_i32 = arith.constant 0 : i32
    %c0_i32_0 = arith.constant 0 : i32
    return %arg0, %c0_i32 : i32, i32
  }
}

</mosaic_0001>

<llo_original>
// kernel: tpu_custom_call.1
$region0: #{tpu_custom_call.1}
  #allocation0 [shape = 'u32[]', space=smem, size = 0x4, offset = 0x4, fixed_abs, tag = 'smem constant byte address 0x4 - core index']
  #allocation1 [shape = 'u32[144,128]{1,0:T(1,128)}', space=vmem, size = 0x12000, scoped, tag = 'internal scratch']
  %s0 = inlined_call_operand.vmem [shape: f32[32,8], index: 0, kind: input, shape index: {}]
  %s1 = inlined_call_operand.vmem [shape: f32[8,128], index: 1, kind: input, shape index: {}]
  %s2 = inlined_call_operand.vmem [shape: f32[1,128], index: 2, kind: input, shape index: {}]
  %s3 = inlined_call_operand.hbm [shape: f32[32,128], index: 3, kind: output, shape index: {}]
  %s4 = sld [smem:[#allocation0]]
  $region22: #{tpu_custom_call.1} parent=0
    _
  %s6 = ssub.s32 1, %s4
  %s7 = scalar_select 0, %s6, %s4
  $region1: #{tpu_custom_call.1} parent=0
    #allocation2 [shape = 'u8[16384]{0}', space=vmem, size = 0x4000, scoped, tag = 'output window, operand 0, single buffered']
    #allocation3 [shape = 's32[1]{0}', space=sflag, size = 0x4, scoped, tag = 'scoped memory for tpu_custom_call.1']
    %8 = vsyncpa [#allocation3], 0
    // Predicated region
    $region2: #{tpu_custom_call.1} parent=1 // pred_check
      _
    $region3: #{tpu_custom_call.1} parent=1 // pred_check_branch
      %10 = sbr.rel (0) target = $region5
    $region4: #{tpu_custom_call.1} parent=1 // pred_region
      _
    $region5: #{tpu_custom_call.1} parent=1 // pred_fallthru
      _
    // Predicated region
    $region6: #{tpu_custom_call.1} parent=1 // pred_check
      _
    $region7: #{tpu_custom_call.1} parent=1 // pred_check_branch
      %12 = sbr.rel (0) target = $region9
    $region8: #{tpu_custom_call.1} parent=1 // pred_region
      _
    $region9: #{tpu_custom_call.1} parent=1 // pred_fallthru
      _
    // Predicated region
    $region10: #{tpu_custom_call.1} parent=1 // pred_check
      _
    $region11: #{tpu_custom_call.1} parent=1 // pred_check_branch
      %14 = sbr.rel (0) target = $region13
    $region12: #{tpu_custom_call.1} parent=1 // pred_region
      _
    $region13: #{tpu_custom_call.1} parent=1 // pred_fallthru
      _
    %v15 = vld [vmem:[%s0] sm:$0xff]
    %v16 = vld [vmem:[%s0 + $0x8] sm:$0xff]
    %v17 = vld [vmem:[%s0 + $0x10] sm:$0xff]
    %v18 = vld [vmem:[%s0 + $0x18] sm:$0xff]
    %v19 = vld [vmem:[%s1] sm:$0xff]
    %v20 = vld [vmem:[%s2] sm:$0x1]
    %v22 = vlaneseq
    %v23 = vshrl.u32 %v22, 7
    %v24 = vsub.s32 0, %v23
    %v25 = vrot.slane %v20, %v24
    %vm27 = vcmask 64512
    %v29 = vsel %vm27, %v15, 0
    %v32 = vsel %vm27, %v16, 0
    %v35 = vsel %vm27, %v17, 0
    %v38 = vsel %vm27, %v18, 0
    %40 = vmatprep.subr.mxu0 0.0
    %41 = vmatpush1.msra.mxu0 %v19
    %42 = vmatprep.subr.mxu0 0.0
    %43 = vmatpush1.msra.mxu0 0.0
    %44 = vmatprep.subr.mxu0 0.0
    %45 = vmatpush1.msra.mxu0 0.0
    %46 = vmatprep.subr.mxu0 0.0
    %47 = vmatpush1.msra.mxu0 0.0
    %48 = vmatprep.subr.mxu0 0.0
    %49 = vmatpush1.msra.mxu0 0.0
    %50 = vmatprep.subr.mxu0 0.0
    %51 = vmatpush1.msra.mxu0 0.0
    %52 = vmatprep.subr.mxu0 0.0
    %53 = vmatpush1.msra.mxu0 0.0
    %54 = vmatprep.subr.mxu0 0.0
    %55 = vmatpush1.msra.mxu0 0.0
    %56 = vmatprep.subr.mxu0 0.0
    %57 = vmatpush1.msra.mxu0 0.0
    %58 = vmatprep.subr.mxu0 0.0
    %59 = vmatpush1.msra.mxu0 0.0
    %60 = vmatprep.subr.mxu0 0.0
    %61 = vmatpush1.msra.mxu0 0.0
    %62 = vmatprep.subr.mxu0 0.0
    %63 = vmatpush1.msra.mxu0 0.0
    %64 = vmatprep.subr.mxu0 0.0
    %65 = vmatpush1.msra.mxu0 0.0
    %66 = vmatprep.subr.mxu0 0.0
    %67 = vmatpush1.msra.mxu0 0.0
    %68 = vmatprep.subr.mxu0 0.0
    %69 = vmatpush1.msra.mxu0 0.0
    %70 = vmatprep.subr.mxu0 0.0
    %71 = vmatpush1.msra.mxu0 0.0
    %72 = vmatprep.subr.mxu0 0.0
    %73 = vmatpush1.msra.mxu0 0.0
    %74 = vmatprep.subr.mxu0 0.0
    %75 = vmatpush1.msra.mxu0 0.0
    %76 = vmatprep.subr.mxu0 0.0
    %77 = vmatpush1.msra.mxu0 0.0
    %78 = vmatprep.subr.mxu0 0.0
    %79 = vmatpush1.msra.mxu0 0.0
    %80 = vmatprep.subr.mxu0 0.0
    %81 = vmatpush1.msra.mxu0 0.0
    %82 = vmatprep.subr.mxu0 0.0
    %83 = vmatpush1.msra.mxu0 0.0
    %84 = vmatprep.subr.mxu0 0.0
    %85 = vmatpush1.msra.mxu0 0.0
    %86 = vmatprep.subr.mxu0 0.0
    %87 = vmatpush1.msra.mxu0 0.0
    %88 = vmatprep.subr.mxu0 0.0
    %89 = vmatpush1.msra.mxu0 0.0
    %90 = vmatprep.subr.mxu0 0.0
    %91 = vmatpush1.msra.mxu0 0.0
    %92 = vmatprep.subr.mxu0 0.0
    %93 = vmatpush1.msra.mxu0 0.0
    %94 = vmatprep.subr.mxu0 0.0
    %95 = vmatpush1.msra.mxu0 0.0
    %96 = vmatprep.subr.mxu0 0.0
    %97 = vmatpush1.msra.mxu0 0.0
    %98 = vmatprep.subr.mxu0 0.0
    %99 = vmatpush1.msra.mxu0 0.0
    %100 = vmatprep.subr.mxu0 0.0
    %101 = vmatpush1.msra.mxu0 0.0
    %102 = vmatprep.subr.mxu0 0.0
    %103 = vmatpush1.msra.mxu0 0.0
    %104 = vmatprep.mubr.f32.mxu0 0.0
    %105 = vmatmul.mubr.f32.gmra.mrb[0].mxu0 %v29
    %v106 = vpop.f32.mrb[0].mxu0
    %v107 = vadd.f32 %v25, %v106
    %v108 = vpop.f32.mrb[0].mxu0
    %109 = vmatprep.mubr.f32.mxu0 0.0
    %110 = vmatmul.mubr.f32.gmra.mrb[0].mxu0 %v32
    %v111 = vpop.f32.mrb[0].mxu0
    %v112 = vadd.f32 %v25, %v111
    %v113 = vpop.f32.mrb[0].mxu0
    %114 = vmatprep.mubr.f32.mxu0 0.0
    %115 = vmatmul.mubr.f32.gmra.mrb[0].mxu0 %v35
    %v116 = vpop.f32.mrb[0].mxu0
    %v117 = vadd.f32 %v25, %v116
    %v118 = vpop.f32.mrb[0].mxu0
    %119 = vmatprep.mubr.f32.mxu0 0.0
    %120 = vmatmul.mubr.f32.gmra.mrb[0].mxu0 %v38
    %v121 = vpop.f32.mrb[0].mxu0
    %v122 = vadd.f32 %v25, %v121
    %v123 = vpop.f32.mrb[0].mxu0
    %124 = vdwg.mxu0
    %125 = vst [vmem:[#allocation2] sm:$0xff] %v107
    %126 = vst [vmem:[#allocation2 + $0x8] sm:$0xff] %v112
    %127 = vst [vmem:[#allocation2 + $0x10] sm:$0xff] %v117
    %128 = vst [vmem:[#allocation2 + $0x18] sm:$0xff] %v122
    // Predicated region
    $region14: #{tpu_custom_call.1} parent=1 // pred_check
      _
    $region15: #{tpu_custom_call.1} parent=1 // pred_check_branch
      %130 = sbr.rel (0) target = $region17
    $region16: #{tpu_custom_call.1} parent=1 // pred_region
      %s132 = ssub.s32 512, 512
      %133 = vsyncadd [#allocation3], %s132
      %s134 = sshll.u32 [#allocation2], 4
      %s135 = int_to_ptr.vmem [resolvable:$true] %s134
      %140 = dma.vmem_to_hbm [thread:$0]  %s135, 512, %s3, [#allocation3], 128, 128, 8
    $region17: #{tpu_custom_call.1} parent=1 // pred_fallthru
      _
    // Predicated region
    $region18: #{tpu_custom_call.1} parent=1 // pred_check
      _
    $region19: #{tpu_custom_call.1} parent=1 // pred_check_branch
      %142 = sbr.rel (0) target = $region21
    $region20: #{tpu_custom_call.1} parent=1 // pred_region
      %143 = dma.done [#allocation3], 512
    $region21: #{tpu_custom_call.1} parent=1 // pred_fallthru
      _
    %144 = vsyncpa [#allocation3], 1

</llo_original>
